<compile_context>
chip_gen: v5e
topology: v5e:2x2
jax: 0.10.0
libtpu: 0.0.40
codegen_flags: <defaults>
</compile_context>

<pallas_src>
import functools

import jax
import jax.numpy as jnp
from jax.experimental import pallas as pl
from jax.experimental.pallas import tpu as pltpu


def _round_up(x, m):
    return ((x + m - 1) // m) * m


def _cdiv(a, b):
    return (a + b - 1) // b


def mlp_logsoftmax_kernel(x_ref, w0_ref, b0_ref, w1_ref, b1_ref,
                          w2_ref, b2_ref, o_ref):
    # Cast after the load so the x DMA carries the input's native dtype.
    x = x_ref[...].astype(jnp.float32)                    # (TB, D)

    # fc0 + relu   (hidden padded 100 -> 128; zero cols give zero activations)
    h0 = jnp.dot(x, w0_ref[...], preferred_element_type=jnp.float32)
    h0 = jnp.maximum(h0 + b0_ref[...], 0.0)               # (TB, 128)

    # fc1 + relu   (hidden padded 50 -> 64)
    h1 = jnp.dot(h0, w1_ref[...], preferred_element_type=jnp.float32)
    h1 = jnp.maximum(h1 + b1_ref[...], 0.0)               # (TB, 64)

    # fc2
    logits = jnp.dot(h1, w2_ref[...], preferred_element_type=jnp.float32)
    logits = logits + b2_ref[...]                         # (TB, 10)

    # log_softmax over dim=1 (numerically stable)
    m = jnp.max(logits, axis=-1, keepdims=True)
    shifted = logits - m
    lse = jnp.log(jnp.sum(jnp.exp(shifted), axis=-1, keepdims=True))
    o_ref[...] = shifted - lse


@functools.partial(jax.jit, static_argnames=("image_size",))
def _mlp_forward_impl(x2d, w0, b0, w1, b1, w2, b2, *, image_size):
    batch = x2d.shape[0]
    n_out = w2.shape[1]
    x_bytes = jnp.dtype(x2d.dtype).itemsize

    # --- pad hidden widths once (zero cols/rows: numerically exact) ---------
    H0 = _round_up(w0.shape[1], 128)          # 100 -> 128
    H1 = _round_up(w1.shape[1], 64)           # 50  -> 64
    w0 = jnp.pad(w0, ((0, 0), (0, H0 - w0.shape[1])))
    b0 = jnp.pad(b0, ((0, 0), (0, H0 - b0.shape[1])))
    w1 = jnp.pad(w1, ((0, H0 - w1.shape[0]), (0, H1 - w1.shape[1])))
    b1 = jnp.pad(b1, ((0, 0), (0, H1 - b1.shape[1])))
    w2 = jnp.pad(w2, ((0, H1 - w2.shape[0]), (0, 0)))

    # --- batch tiling --------------------------------------------------------
    MAX_TB = 1024
    if batch <= 256:
        # Single tile; TB == full batch dim is always a legal block shape.
        TB = batch
    elif batch <= 2 * MAX_TB:
        # Exactly two (near-)balanced tiles -> both v7x TensorCores busy.
        TB = _round_up(_cdiv(batch, 2), 8)
    else:
        # Even tile count (balanced across 2 TCs), each tile <= MAX_TB.
        n_tiles = _round_up(_cdiv(batch, MAX_TB), 2)
        TB = _round_up(_cdiv(batch, n_tiles), 8)
    grid = (_cdiv(batch, TB),)
    # No jnp.pad of x: any trailing partial block is handled by Pallas
    # (garbage rows are computed but their writes are masked out).

    # --- VMEM budget (explicit; ~25% headroom under v7x's 64 MiB) -----------
    weight_bytes = 4 * (w0.size + b0.size + w1.size + b1.size + w2.size + b2.size)
    x_tile_bytes = TB * image_size * x_bytes
    out_tile_bytes = TB * n_out * 4
    interm_bytes = TB * (H0 + H1 + 4 * n_out) * 4
    vmem_need = (2 * x_tile_bytes + 2 * out_tile_bytes + 2 * weight_bytes
                 + interm_bytes + (4 << 20))
    vmem_limit = int(min(48 << 20, max(8 << 20, vmem_need)))

    # --- cost estimate (advisory) --------------------------------------------
    flops = 2 * batch * (image_size * H0 + H0 * H1 + H1 * n_out)
    cost = pl.CostEstimate(
        flops=flops,
        transcendentals=batch * (n_out + 1),
        bytes_accessed=batch * (image_size * x_bytes + n_out * 4) + weight_bytes,
    )

    # x / out tiled over batch; weights & biases resident (constant index_map).
    x_spec = pl.BlockSpec((TB, image_size), lambda i: (i, 0))
    out_spec = pl.BlockSpec((TB, n_out), lambda i: (i, 0))

    def const_spec(arr):
        return pl.BlockSpec(arr.shape, lambda i: (0, 0))

    out = pl.pallas_call(
        mlp_logsoftmax_kernel,
        out_shape=jax.ShapeDtypeStruct((batch, n_out), jnp.float32),
        grid=grid,
        in_specs=[
            x_spec,
            const_spec(w0), const_spec(b0),
            const_spec(w1), const_spec(b1),
            const_spec(w2), const_spec(b2),
        ],
        out_specs=out_spec,
        compiler_params=pltpu.CompilerParams(
            dimension_semantics=("parallel",),
            vmem_limit_bytes=vmem_limit,
        ),
        cost_estimate=cost,
    )(x2d, w0, b0, w1, b1, w2, b2)

    return out


def mlp_forward(x, params):
    """x: (batch, C, H, W) or (batch, image_size); returns (batch, 10) f32."""
    w0, b0, w1, b1, w2, b2 = params
    image_size = w0.shape[0]
    x2d = x.reshape(-1, image_size)     # native dtype; cast happens in-kernel
    return _mlp_forward_impl(x2d, w0, b0, w1, b1, w2, b2,
                             image_size=image_size)


def init_params(key, image_size):
    """Deterministic init mimicking nn.Linear (uniform +- 1/sqrt(fan_in)).
    Weights are stored transposed: (in_features, out_features)."""
    dims = [(image_size, 100), (100, 50), (50, 10)]
    params = []
    for (fan_in, fan_out) in dims:
        key, kw, kb = jax.random.split(key, 3)
        bound = 1.0 / jnp.sqrt(jnp.float32(fan_in))
        w = jax.random.uniform(kw, (fan_in, fan_out), jnp.float32, -bound, bound)
        b = jax.random.uniform(kb, (1, fan_out), jnp.float32, -bound, bound)
        params += [w, b]
    return params


def reference_forward(x, params):
    w0, b0, w1, b1, w2, b2 = params
    x2d = x.reshape(-1, w0.shape[0]).astype(jnp.float32)
    h0 = jnp.maximum(x2d @ w0 + b0, 0.0)
    h1 = jnp.maximum(h0 @ w1 + b1, 0.0)
    logits = h1 @ w2 + b2
    return jax.nn.log_softmax(logits, axis=1)


if __name__ == "__main__":
    key = jax.random.PRNGKey(0)
    batch, C, H, W = 8, 1, 8, 8          # image_size = C*H*W = 64
    image_size = C * H * W

    kx, kp = jax.random.split(key)
    x = jax.random.normal(kx, (batch, C, H, W), jnp.float32)
    params = init_params(kp, image_size)

    out = mlp_forward(x, params)
    out = jax.block_until_ready(out)

    ref = reference_forward(x, params)
    assert out.shape == (batch, 10)
    assert jnp.allclose(out, ref, atol=1e-5, rtol=1e-5)

    # Multi-tile batch: grid=2 balanced tiles + a masked partial last block.
    big_batch = 1111
    xb = jax.random.normal(kx, (big_batch, C, H, W), jnp.float32)
    out_b = jax.block_until_ready(mlp_forward(xb, params))
    ref_b = reference_forward(xb, params)
    assert out_b.shape == (big_batch, 10)
    assert jnp.allclose(out_b, ref_b, atol=1e-5, rtol=1e-5)

    print("KERNEL_OK")
</pallas_src>

<mosaic_0001>
module attributes {stable_mosaic.version = 11 : i64} {
  func.func @mlp_logsoftmax_kernel(%arg0: i32, %arg1: memref<8x64xf32, #tpu.memory_space<vmem>>, %arg2: memref<64x128xf32, #tpu.memory_space<vmem>>, %arg3: memref<1x128xf32, #tpu.memory_space<vmem>>, %arg4: memref<128x64xf32, #tpu.memory_space<vmem>>, %arg5: memref<1x64xf32, #tpu.memory_space<vmem>>, %arg6: memref<64x10xf32, #tpu.memory_space<vmem>>, %arg7: memref<1x10xf32, #tpu.memory_space<vmem>>, %arg8: memref<8x10xf32, #tpu.memory_space<vmem>>) attributes {dimension_semantics = [#tpu.dimension_semantics<parallel>], iteration_bounds = array<i64: 1>, scalar_prefetch = 0 : i64, scratch_operands = 0 : i64, tpu.core_type = #tpu.core_type<tc>, window_params = [{transform_indices = @transform_0, window_bounds = array<i64: 8, 64>}, {pipeline_mode = #tpu.pipeline_mode<synchronous>, transform_indices = @transform_1, window_bounds = array<i64: 64, 128>}, {pipeline_mode = #tpu.pipeline_mode<synchronous>, transform_indices = @transform_2, window_bounds = array<i64: 1, 128>}, {pipeline_mode = #tpu.pipeline_mode<synchronous>, transform_indices = @transform_3, window_bounds = array<i64: 128, 64>}, {pipeline_mode = #tpu.pipeline_mode<synchronous>, transform_indices = @transform_4, window_bounds = array<i64: 1, 64>}, {pipeline_mode = #tpu.pipeline_mode<synchronous>, transform_indices = @transform_5, window_bounds = array<i64: 64, 10>}, {pipeline_mode = #tpu.pipeline_mode<synchronous>, transform_indices = @transform_6, window_bounds = array<i64: 1, 10>}, {transform_indices = @transform_7, window_bounds = array<i64: 8, 10>}]} {
    %c0 = arith.constant 0 : index
    %c0_0 = arith.constant 0 : index
    %0 = vector.load %arg1[%c0, %c0_0] : memref<8x64xf32, #tpu.memory_space<vmem>>, vector<8x64xf32>
    %c0_1 = arith.constant 0 : index
    %c0_2 = arith.constant 0 : index
    %1 = vector.load %arg2[%c0_1, %c0_2] : memref<64x128xf32, #tpu.memory_space<vmem>>, vector<64x128xf32>
    %cst = arith.constant dense<0.000000e+00> : vector<8x128xf32>
    %2 = tpu.matmul %0, %1, %cst {dimension_numbers = #tpu.dot_dimension_numbers<[1], [0], [0], [1], [0, 0, 1, 1], [], []>} : vector<8x64xf32>, vector<64x128xf32>, vector<8x128xf32> -> vector<8x128xf32>
    %c0_3 = arith.constant 0 : index
    %c0_4 = arith.constant 0 : index
    %3 = vector.load %arg3[%c0_3, %c0_4] : memref<1x128xf32, #tpu.memory_space<vmem>>, vector<1x128xf32>
    %4 = vector.broadcast %3 : vector<1x128xf32> to vector<8x128xf32>
    %5 = arith.addf %2, %4 : vector<8x128xf32>
    %cst_5 = arith.constant 0.000000e+00 : f32
    %6 = vector.broadcast %cst_5 : f32 to vector<8x128xf32>
    %7 = arith.maximumf %5, %6 : vector<8x128xf32>
    %c0_6 = arith.constant 0 : index
    %c0_7 = arith.constant 0 : index
    %8 = vector.load %arg4[%c0_6, %c0_7] : memref<128x64xf32, #tpu.memory_space<vmem>>, vector<128x64xf32>
    %cst_8 = arith.constant dense<0.000000e+00> : vector<8x64xf32>
    %9 = tpu.matmul %7, %8, %cst_8 {dimension_numbers = #tpu.dot_dimension_numbers<[1], [0], [0], [1], [0, 0, 1, 1], [], []>} : vector<8x128xf32>, vector<128x64xf32>, vector<8x64xf32> -> vector<8x64xf32>
    %c0_9 = arith.constant 0 : index
    %c0_10 = arith.constant 0 : index
    %10 = vector.load %arg5[%c0_9, %c0_10] : memref<1x64xf32, #tpu.memory_space<vmem>>, vector<1x64xf32>
    %11 = vector.broadcast %10 : vector<1x64xf32> to vector<8x64xf32>
    %12 = arith.addf %9, %11 : vector<8x64xf32>
    %cst_11 = arith.constant 0.000000e+00 : f32
    %13 = vector.broadcast %cst_11 : f32 to vector<8x64xf32>
    %14 = arith.maximumf %12, %13 : vector<8x64xf32>
    %c0_12 = arith.constant 0 : index
    %c0_13 = arith.constant 0 : index
    %15 = vector.load %arg6[%c0_12, %c0_13] : memref<64x10xf32, #tpu.memory_space<vmem>>, vector<64x10xf32>
    %cst_14 = arith.constant dense<0.000000e+00> : vector<8x10xf32>
    %16 = tpu.matmul %14, %15, %cst_14 {dimension_numbers = #tpu.dot_dimension_numbers<[1], [0], [0], [1], [0, 0, 1, 1], [], []>} : vector<8x64xf32>, vector<64x10xf32>, vector<8x10xf32> -> vector<8x10xf32>
    %c0_15 = arith.constant 0 : index
    %c0_16 = arith.constant 0 : index
    %17 = vector.load %arg7[%c0_15, %c0_16] : memref<1x10xf32, #tpu.memory_space<vmem>>, vector<1x10xf32>
    %18 = vector.broadcast %17 : vector<1x10xf32> to vector<8x10xf32>
    %19 = arith.addf %16, %18 : vector<8x10xf32>
    %cst_17 = arith.constant dense<0xFF800000> : vector<8xf32>
    %20 = vector.multi_reduction <maximumf>, %19, %cst_17 [1] : vector<8x10xf32> to vector<8xf32>
    %21 = vector.shape_cast %20 : vector<8xf32> to vector<8x1xf32>
    %22 = vector.broadcast %21 : vector<8x1xf32> to vector<8x10xf32>
    %23 = arith.subf %19, %22 : vector<8x10xf32>
    %24 = math.exp %23 : vector<8x10xf32>
    %cst_18 = arith.constant dense<0.000000e+00> : vector<8xf32>
    %25 = vector.multi_reduction <add>, %24, %cst_18 [1] : vector<8x10xf32> to vector<8xf32>
    %26 = vector.shape_cast %25 : vector<8xf32> to vector<8x1xf32>
    %27 = math.log %26 : vector<8x1xf32>
    %28 = vector.broadcast %27 : vector<8x1xf32> to vector<8x10xf32>
    %29 = arith.subf %23, %28 : vector<8x10xf32>
    %c0_19 = arith.constant 0 : index
    %c0_20 = arith.constant 0 : index
    %30 = vector.load %arg8[%c0_19, %c0_20] : memref<8x10xf32, #tpu.memory_space<vmem>>, vector<8x10xf32>
    tpu.vector_store %arg8[%c0_19, %c0_20], %29 {strides = array<i32>} : memref<8x10xf32, #tpu.memory_space<vmem>>, vector<8x10xf32>,
    return
  }
  func.func @transform_0(%arg0: i32) -> (i32, i32) {
    %c0_i32 = arith.constant 0 : i32
    %c0_i32_0 = arith.constant 0 : i32
    return %arg0, %c0_i32 : i32, i32
  }
  func.func @transform_1(%arg0: i32) -> (i32, i32) {
    %c0_i32 = arith.constant 0 : i32
    %c0_i32_0 = arith.constant 0 : i32
    %c0_i32_1 = arith.constant 0 : i32
    return %c0_i32, %c0_i32_0 : i32, i32
  }
  func.func @transform_2(%arg0: i32) -> (i32, i32) {
    %c0_i32 = arith.constant 0 : i32
    %c0_i32_0 = arith.constant 0 : i32
    %c0_i32_1 = arith.constant 0 : i32
    return %c0_i32, %c0_i32_0 : i32, i32
  }
  func.func @transform_3(%arg0: i32) -> (i32, i32) {
    %c0_i32 = arith.constant 0 : i32
    %c0_i32_0 = arith.constant 0 : i32
    %c0_i32_1 = arith.constant 0 : i32
    return %c0_i32, %c0_i32_0 : i32, i32
  }
  func.func @transform_4(%arg0: i32) -> (i32, i32) {
    %c0_i32 = arith.constant 0 : i32
    %c0_i32_0 = arith.constant 0 : i32
    %c0_i32_1 = arith.constant 0 : i32
    return %c0_i32, %c0_i32_0 : i32, i32
  }
  func.func @transform_5(%arg0: i32) -> (i32, i32) {
    %c0_i32 = arith.constant 0 : i32
    %c0_i32_0 = arith.constant 0 : i32
    %c0_i32_1 = arith.constant 0 : i32
    return %c0_i32, %c0_i32_0 : i32, i32
  }
  func.func @transform_6(%arg0: i32) -> (i32, i32) {
    %c0_i32 = arith.constant 0 : i32
    %c0_i32_0 = arith.constant 0 : i32
    %c0_i32_1 = arith.constant 0 : i32
    return %c0_i32, %c0_i32_0 : i32, i32
  }
  func.func @transform_7(%arg0: i32) -> (i32, i32) {
    %c0_i32 = arith.constant 0 : i32
    %c0_i32_0 = arith.constant 0 : i32
    return %arg0, %c0_i32 : i32, i32
  }
}

</mosaic_0001>

<llo_original>
// kernel: _mlp_forward_impl.1
$region0: #{_mlp_forward_impl.1}
  #allocation0 [shape = 'u32[]', space=smem, size = 0x4, offset = 0x4, fixed_abs, tag = 'smem constant byte address 0x4 - core index']
  #allocation1 [shape = 'u32[72,128]{1,0:T(1,128)}', space=vmem, size = 0x9000, scoped, tag = 'internal scratch']
  %s0 = inlined_call_operand.vmem [shape: f32[8,64], index: 0, kind: input, shape index: {}]
  %s1 = inlined_call_operand.vmem [shape: f32[64,128], index: 1, kind: input, shape index: {}]
  %s2 = inlined_call_operand.vmem [shape: f32[1,128], index: 2, kind: input, shape index: {}]
  %s3 = inlined_call_operand.vmem [shape: f32[128,64], index: 3, kind: input, shape index: {}]
  %s4 = inlined_call_operand.vmem [shape: f32[1,64], index: 4, kind: input, shape index: {}]
  %s5 = inlined_call_operand.vmem [shape: f32[64,10], index: 5, kind: input, shape index: {}]
  %s6 = inlined_call_operand.vmem [shape: f32[1,10], index: 6, kind: input, shape index: {}]
  %s7 = inlined_call_operand.hbm [shape: f32[8,10], index: 7, kind: output, shape index: {}]
  %s8 = sld [smem:[#allocation0]]
  $region38: #{_mlp_forward_impl.1} parent=0
    _
  %s10 = ssub.s32 1, %s8
  %s11 = scalar_select 0, %s10, %s8
  $region1: #{_mlp_forward_impl.1} parent=0
    #allocation2 [shape = 'u8[4096]{0}', space=vmem, size = 0x1000, scoped, tag = 'output window, operand 0, single buffered']
    #allocation3 [shape = 's32[1]{0}', space=sflag, size = 0x4, scoped, tag = 'scoped memory for _mlp_forward_impl.1']
    %12 = vsyncpa [#allocation3], 0
    // Predicated region
    $region2: #{_mlp_forward_impl.1} parent=1 // pred_check
      _
    $region3: #{_mlp_forward_impl.1} parent=1 // pred_check_branch
      %14 = sbr.rel (0) target = $region5
    $region4: #{_mlp_forward_impl.1} parent=1 // pred_region
      _
    $region5: #{_mlp_forward_impl.1} parent=1 // pred_fallthru
      _
    // Predicated region
    $region6: #{_mlp_forward_impl.1} parent=1 // pred_check
      _
    $region7: #{_mlp_forward_impl.1} parent=1 // pred_check_branch
      %16 = sbr.rel (0) target = $region9
    $region8: #{_mlp_forward_impl.1} parent=1 // pred_region
      _
    $region9: #{_mlp_forward_impl.1} parent=1 // pred_fallthru
      _
    // Predicated region
    $region10: #{_mlp_forward_impl.1} parent=1 // pred_check
      _
    $region11: #{_mlp_forward_impl.1} parent=1 // pred_check_branch
      %18 = sbr.rel (0) target = $region13
    $region12: #{_mlp_forward_impl.1} parent=1 // pred_region
      _
    $region13: #{_mlp_forward_impl.1} parent=1 // pred_fallthru
      _
    // Predicated region
    $region14: #{_mlp_forward_impl.1} parent=1 // pred_check
      _
    $region15: #{_mlp_forward_impl.1} parent=1 // pred_check_branch
      %20 = sbr.rel (0) target = $region17
    $region16: #{_mlp_forward_impl.1} parent=1 // pred_region
      _
    $region17: #{_mlp_forward_impl.1} parent=1 // pred_fallthru
      _
    // Predicated region
    $region18: #{_mlp_forward_impl.1} parent=1 // pred_check
      _
    $region19: #{_mlp_forward_impl.1} parent=1 // pred_check_branch
      %22 = sbr.rel (0) target = $region21
    $region20: #{_mlp_forward_impl.1} parent=1 // pred_region
      _
    $region21: #{_mlp_forward_impl.1} parent=1 // pred_fallthru
      _
    // Predicated region
    $region22: #{_mlp_forward_impl.1} parent=1 // pred_check
      _
    $region23: #{_mlp_forward_impl.1} parent=1 // pred_check_branch
      %24 = sbr.rel (0) target = $region25
    $region24: #{_mlp_forward_impl.1} parent=1 // pred_region
      _
    $region25: #{_mlp_forward_impl.1} parent=1 // pred_fallthru
      _
    // Predicated region
    $region26: #{_mlp_forward_impl.1} parent=1 // pred_check
      _
    $region27: #{_mlp_forward_impl.1} parent=1 // pred_check_branch
      %26 = sbr.rel (0) target = $region29
    $region28: #{_mlp_forward_impl.1} parent=1 // pred_region
      _
    $region29: #{_mlp_forward_impl.1} parent=1 // pred_fallthru
      _
    %v27 = vld [vmem:[%s0] sm:$0xff]
    %v28 = vld [vmem:[%s1] sm:$0xff]
    %v29 = vld [vmem:[%s1 + $0x8] sm:$0xff]
    %v30 = vld [vmem:[%s1 + $0x10] sm:$0xff]
    %v31 = vld [vmem:[%s1 + $0x18] sm:$0xff]
    %v32 = vld [vmem:[%s1 + $0x20] sm:$0xff]
    %v33 = vld [vmem:[%s1 + $0x28] sm:$0xff]
    %v34 = vld [vmem:[%s1 + $0x30] sm:$0xff]
    %v35 = vld [vmem:[%s1 + $0x38] sm:$0xff]
    %v36 = vld [vmem:[%s2] sm:$0x1]
    %v38 = vperm.slane %v36, 0
    %vm40 = vcmask 523264
    %v42 = vsel %vm40, %v27, 0
    %44 = vmatpush.msra.mxu0 0.0
    %45 = vmatpush.msra.mxu0 0.0
    %46 = vmatpush.msra.mxu0 0.0
    %47 = vmatpush.msra.mxu0 0.0
    %48 = vmatpush.msra.mxu0 0.0
    %49 = vmatpush.msra.mxu0 0.0
    %50 = vmatpush.msra.mxu0 0.0
    %51 = vmatpush.msra.mxu0 0.0
    %52 = vmatpush.msra.mxu0 %v35
    %53 = vmatpush.msra.mxu0 %v34
    %54 = vmatpush.msra.mxu0 %v33
    %55 = vmatpush.msra.mxu0 %v32
    %56 = vmatpush.msra.mxu0 %v31
    %57 = vmatpush.msra.mxu0 %v30
    %58 = vmatpush.msra.mxu0 %v29
    %59 = vmatpush.msra.mxu0 %v28
    %60 = vmatmul.f32.gmra.mxu0 %v42
    %v61 = vpop.f32.mrf.mxu0
    %v62 = vadd.f32 %v38, %v61
    %63 = vdwg.mxu0
    %v64 = vmax.f32 %v62, 0.0
    %v65 = vld [vmem:[%s3] sm:$0xff]
    %v66 = vld [vmem:[%s3 + $0x8] sm:$0xff]
    %v67 = vld [vmem:[%s3 + $0x10] sm:$0xff]
    %v68 = vld [vmem:[%s3 + $0x18] sm:$0xff]
    %v69 = vld [vmem:[%s3 + $0x20] sm:$0xff]
    %v70 = vld [vmem:[%s3 + $0x28] sm:$0xff]
    %v71 = vld [vmem:[%s3 + $0x30] sm:$0xff]
    %v72 = vld [vmem:[%s3 + $0x38] sm:$0xff]
    %v73 = vld [vmem:[%s3 + $0x40] sm:$0xff]
    %v74 = vld [vmem:[%s3 + $0x48] sm:$0xff]
    %v75 = vld [vmem:[%s3 + $0x50] sm:$0xff]
    %v76 = vld [vmem:[%s3 + $0x58] sm:$0xff]
    %v77 = vld [vmem:[%s3 + $0x60] sm:$0xff]
    %v78 = vld [vmem:[%s3 + $0x68] sm:$0xff]
    %v79 = vld [vmem:[%s3 + $0x70] sm:$0xff]
    %v80 = vld [vmem:[%s3 + $0x78] sm:$0xff]
    %v81 = vld [vmem:[%s4] sm:$0x1]
    %v83 = vperm.slane %v81, 0
    %85 = vmatpush.msra.mxu0 %v80
    %86 = vmatpush.msra.mxu0 %v79
    %87 = vmatpush.msra.mxu0 %v78
    %88 = vmatpush.msra.mxu0 %v77
    %89 = vmatpush.msra.mxu0 %v76
    %90 = vmatpush.msra.mxu0 %v75
    %91 = vmatpush.msra.mxu0 %v74
    %92 = vmatpush.msra.mxu0 %v73
    %93 = vmatpush.msra.mxu0 %v72
    %94 = vmatpush.msra.mxu0 %v71
    %95 = vmatpush.msra.mxu0 %v70
    %96 = vmatpush.msra.mxu0 %v69
    %97 = vmatpush.msra.mxu0 %v68
    %98 = vmatpush.msra.mxu0 %v67
    %99 = vmatpush.msra.mxu0 %v66
    %100 = vmatpush.msra.mxu0 %v65
    %101 = vmatmul.f32.gmra.mxu0 %v64
    %v102 = vpop.f32.mrf.mxu0
    %v103 = vadd.f32 %v83, %v102
    %104 = vdwg.mxu0
    %v105 = vmax.f32 %v103, 0.0
    %v106 = vld [vmem:[%s5] sm:$0xff]
    %v107 = vld [vmem:[%s5 + $0x8] sm:$0xff]
    %v108 = vld [vmem:[%s5 + $0x10] sm:$0xff]
    %v109 = vld [vmem:[%s5 + $0x18] sm:$0xff]
    %v110 = vld [vmem:[%s5 + $0x20] sm:$0xff]
    %v111 = vld [vmem:[%s5 + $0x28] sm:$0xff]
    %v112 = vld [vmem:[%s5 + $0x30] sm:$0xff]
    %v113 = vld [vmem:[%s5 + $0x38] sm:$0xff]
    %v114 = vld [vmem:[%s6] sm:$0x1]
    %v116 = vperm.slane %v114, 0
    %v119 = vsel %vm40, %v105, 0
    %121 = vmatpush.msra.mxu0 0.0
    %122 = vmatpush.msra.mxu0 0.0
    %123 = vmatpush.msra.mxu0 0.0
    %124 = vmatpush.msra.mxu0 0.0
    %125 = vmatpush.msra.mxu0 0.0
    %126 = vmatpush.msra.mxu0 0.0
    %127 = vmatpush.msra.mxu0 0.0
    %128 = vmatpush.msra.mxu0 0.0
    %129 = vmatpush.msra.mxu0 %v113
    %130 = vmatpush.msra.mxu0 %v112
    %131 = vmatpush.msra.mxu0 %v111
    %132 = vmatpush.msra.mxu0 %v110
    %133 = vmatpush.msra.mxu0 %v109
    %134 = vmatpush.msra.mxu0 %v108
    %135 = vmatpush.msra.mxu0 %v107
    %136 = vmatpush.msra.mxu0 %v106
    %137 = vmatmul.f32.gmra.mxu0 %v119
    %v138 = vpop.f32.mrf.mxu0
    %v139 = vadd.f32 %v116, %v138
    %140 = vdwg.mxu0
    %vm141 = vcmask 80896
    %v142 = vsel %vm141, %v139, -inf
    %143 = vmax.xlane.f32.xlu0 %v142
    %v144 = vpop.xlane.xlu0 %143
    %v145 = vsub.f32 %v139, %v144
    %v146 = vmul.f32 %v145, 1.442695
    %v147 = vpow.pop %v146
    %v148 = vsel %vm141, %v147, 0.0
    %149 = vadd.xlane.f32.xlu0 %v148
    %v150 = vpop.xlane.xlu0 %149
    %v151 = vlog2.pop %v150
    %v152 = vmul.f32 %v151, 0.6931472
    %v153 = vsub.f32 %v145, %v152
    %154 = vst.msk [vmem:[#allocation2] sm:$0xff] %vm141, %v153
    // Predicated region
    $region30: #{_mlp_forward_impl.1} parent=1 // pred_check
      _
    $region31: #{_mlp_forward_impl.1} parent=1 // pred_check_branch
      %156 = sbr.rel (0) target = $region33
    $region32: #{_mlp_forward_impl.1} parent=1 // pred_region
      %158 = vsyncadd [#allocation3], 0
      %s160 = sshll.u32 [#allocation2], 4
      %s161 = int_to_ptr.vmem [resolvable:$true] %s160
      %s162 = sshll.u32 %s7, 4
      %s163 = int_to_ptr.hbm [resolvable:$true] %s162
      %165 = dma.vmem_to_hbm [thread:$0]  %s161, 128, %s163, [#allocation3]
    $region33: #{_mlp_forward_impl.1} parent=1 // pred_fallthru
      _
    // Predicated region
    $region34: #{_mlp_forward_impl.1} parent=1 // pred_check
      _
    $region35: #{_mlp_forward_impl.1} parent=1 // pred_check_branch
      %167 = sbr.rel (0) target = $region37
    $region36: #{_mlp_forward_impl.1} parent=1 // pred_region
      %169 = dma.done [#allocation3], 128
    $region37: #{_mlp_forward_impl.1} parent=1 // pred_fallthru
      _
    %170 = vsyncpa [#allocation3], 1

</llo_original>
